<compile_context>
chip_gen: v5e
topology: v5e:2x2
jax: 0.10.0
libtpu: 0.0.40
codegen_flags: <defaults>
</compile_context>

<pallas_src>
import jax
import jax.numpy as jnp
from jax.experimental import pallas as pl
from jax.experimental.pallas import tpu as pltpu

# ---- small, module-consistent sizes -----------------------------------------
B = 2            # batch
CIN = 3          # input channels (RGB)
H = W = 8        # spatial size of the extracted feature map (13 in the paper)
F = 8            # MemFeatSz  (memory_Nfeat)
G = 4            # query groups per position (64 in the paper)
CFEAT = G * F    # extracted feature channels = 32
S = 16           # MemNumSlots (memory_Nslots)
NCLASS = 10      # n_class
HW = H * W       # 64
BHW = B * HW     # 128
KP = 32          # im2col contraction (9*CIN=27 padded to 32)
GS = G * S       # 64 attention lanes
NCP = 128        # classifier lanes padded to 128 (lane-dense store)


# ---- the fused Pallas kernel (single invocation, batch folded) ---------------
def augmem_kernel(xcols_ref, convw_ref, convb_ref, wqk_ref, wav_ref,
                  summat_ref, pool_ref, clsw_ref, clsb_ref,
                  fused_ref, direct_ref, out_ref):
    # xcols_ref:  (BHW, KP)      im2col'd padded input
    # convw_ref:  (KP, CFEAT)    conv weights as one matrix (zero-padded rows)
    # convb_ref:  (1, CFEAT)
    # wqk_ref:    (CFEAT, GS)    blockdiag_g(memory^T)
    # wav_ref:    (GS, CFEAT)    blockdiag_g(memory)
    # summat_ref: (GS, GS)       blockdiag_g(ones(S,S))  -- per-group sum bcast
    # pool_ref:   (B, BHW)       per-batch mean matrix (1/HW entries)
    # clsw_ref:   (CFEAT, NCP)   classifier weights (padded to 128 lanes)
    # clsb_ref:   (1, NCP)
    # fused_ref:  (BHW, 128)     [att | read | extracted] lane-dense output
    # direct_ref: (B, NCP)
    # out_ref:    (B, NCP)

    # --- 3x3 conv + ReLU as ONE MXU matmul (im2col done in the wrapper) ------
    extracted = jnp.maximum(
        jnp.dot(xcols_ref[...], convw_ref[...],
                preferred_element_type=jnp.float32) + convb_ref[...],
        0.0)                                                  # (BHW, CFEAT)

    # --- memory attention, all G groups fused via block-diagonal matrices ----
    scores = jnp.dot(extracted, wqk_ref[...],
                     preferred_element_type=jnp.float32)      # (BHW, GS)
    # row-global max is a constant per row, hence a valid stabilizer for every
    # per-group softmax on that row.
    row_max = jnp.max(scores, axis=-1, keepdims=True)
    e = jnp.exp(scores - row_max)
    denom = jnp.dot(e, summat_ref[...],
                    preferred_element_type=jnp.float32)       # group sums, bcast
    att = e * pl.reciprocal(denom, approx=True)               # (BHW, GS)

    read = jnp.dot(att, wav_ref[...],
                   preferred_element_type=jnp.float32)        # (BHW, CFEAT)

    # --- pooled classifier heads (mean folded into pool matrix) --------------
    pooled = jnp.dot(pool_ref[...], extracted,
                     preferred_element_type=jnp.float32)      # (B, CFEAT)
    pooled_read = jnp.dot(pool_ref[...], read,
                          preferred_element_type=jnp.float32) # (B, CFEAT)

    clsw = clsw_ref[...]
    clsb = clsb_ref[...]
    direct_ref[...] = jnp.dot(pooled, clsw,
                              preferred_element_type=jnp.float32) + clsb
    out_ref[...] = jnp.dot(pooled_read, clsw,
                           preferred_element_type=jnp.float32) + clsb

    # --- lane-dense fused output: [att(64) | read(32) | extracted(32)] -------
    fused_ref[:, 0:GS] = att
    fused_ref[:, GS:GS + CFEAT] = read
    fused_ref[:, GS + CFEAT:GS + 2 * CFEAT] = extracted


# ---- wrapper ------------------------------------------------------------------
@jax.jit
def augmem_forward(x_nchw, conv_w, conv_b, memory, cls_w, cls_b):
    # layout plumbing (done once, in XLA): NCHW -> NHWC, pad, im2col.
    x = jnp.transpose(x_nchw, (0, 2, 3, 1)).astype(jnp.float32)
    xp = jnp.pad(x, ((0, 0), (1, 1), (1, 1), (0, 0)))
    patches = jnp.stack([xp[:, kh:kh + H, kw:kw + W, :]
                         for kh in range(3) for kw in range(3)],
                        axis=3)                                # (B,H,W,9,CIN)
    x_cols = patches.reshape(BHW, 9 * CIN)
    x_cols = jnp.pad(x_cols, ((0, 0), (0, KP - 9 * CIN)))      # (BHW, 32)

    conv_w_mat = jnp.pad(conv_w.reshape(9 * CIN, CFEAT),
                         ((0, KP - 9 * CIN), (0, 0)))          # (32, CFEAT)

    eye_g = jnp.eye(G, dtype=jnp.float32)
    w_qk = jnp.kron(eye_g, memory.T)                           # (CFEAT, GS)
    w_av = jnp.kron(eye_g, memory)                             # (GS, CFEAT)
    sum_mat = jnp.kron(eye_g, jnp.ones((S, S), jnp.float32))   # (GS, GS)
    pool_mat = jnp.kron(jnp.eye(B, dtype=jnp.float32),
                        jnp.full((1, HW), 1.0 / HW, jnp.float32))  # (B, BHW)

    cls_w_pad = jnp.pad(cls_w, ((0, 0), (0, NCP - NCLASS)))    # (CFEAT, 128)
    cls_b_pad = jnp.pad(cls_b, ((0, 0), (0, NCP - NCLASS)))    # (1, 128)

    grid_spec = pltpu.PrefetchScalarGridSpec(
        num_scalar_prefetch=0,
        grid=(1,),
        in_specs=[
            pl.BlockSpec((BHW, KP), lambda i: (0, 0)),
            pl.BlockSpec((KP, CFEAT), lambda i: (0, 0)),
            pl.BlockSpec((1, CFEAT), lambda i: (0, 0)),
            pl.BlockSpec((CFEAT, GS), lambda i: (0, 0)),
            pl.BlockSpec((GS, CFEAT), lambda i: (0, 0)),
            pl.BlockSpec((GS, GS), lambda i: (0, 0)),
            pl.BlockSpec((B, BHW), lambda i: (0, 0)),
            pl.BlockSpec((CFEAT, NCP), lambda i: (0, 0)),
            pl.BlockSpec((1, NCP), lambda i: (0, 0)),
        ],
        out_specs=[
            pl.BlockSpec((BHW, 128), lambda i: (0, 0)),   # fused att|read|ext
            pl.BlockSpec((B, NCP), lambda i: (0, 0)),     # direct (padded)
            pl.BlockSpec((B, NCP), lambda i: (0, 0)),     # out (padded)
        ],
    )

    fused, direct_pad, out_pad = pl.pallas_call(
        augmem_kernel,
        out_shape=(
            jax.ShapeDtypeStruct((BHW, 128), jnp.float32),
            jax.ShapeDtypeStruct((B, NCP), jnp.float32),
            jax.ShapeDtypeStruct((B, NCP), jnp.float32),
        ),
        grid_spec=grid_spec,
        compiler_params=pltpu.CompilerParams(
            dimension_semantics=("arbitrary",)),
    )(x_cols, conv_w_mat, conv_b, w_qk, w_av, sum_mat, pool_mat,
      cls_w_pad, cls_b_pad)

    # cheap slices / reshapes back to the PyTorch-facing layout.
    att_read = fused[:, :GS].reshape(B, HW, G, S).reshape(B, HW * G, S)
    read = fused[:, GS:GS + CFEAT].reshape(B, HW, G, F).reshape(B, HW * G, F)
    extracted = jnp.transpose(
        fused[:, GS + CFEAT:].reshape(B, H, W, CFEAT), (0, 3, 1, 2))
    direct = direct_pad[:, :NCLASS]
    out = out_pad[:, :NCLASS]
    return direct, out, att_read, read, extracted


# ---- pure-JAX reference (same math, no Pallas) --------------------------------
def reference_forward(x_nchw, conv_w, conv_b, memory, cls_w, cls_b):
    x = jnp.transpose(x_nchw, (0, 2, 3, 1)).astype(jnp.float32)
    xp = jnp.pad(x, ((0, 0), (1, 1), (1, 1), (0, 0)))
    acc = jnp.zeros((B, H, W, CFEAT), jnp.float32)
    for kh in range(3):
        for kw in range(3):
            acc = acc + jnp.einsum('bhwc,cf->bhwf',
                                   xp[:, kh:kh + H, kw:kw + W, :],
                                   conv_w[kh, kw])
    ext = jnp.maximum(acc + conv_b[0], 0.0)                    # (B,H,W,C)
    pooled = ext.reshape(B, HW, CFEAT).mean(axis=1)            # (B,C)
    direct = pooled @ cls_w + cls_b
    q = ext.reshape(B, HW, G, F)
    scores = jnp.einsum('bngf,sf->bngs', q, memory)
    att = jax.nn.softmax(scores, axis=-1)
    read = jnp.einsum('bngs,sf->bngf', att, memory)
    pooled_read = read.reshape(B, HW, CFEAT).mean(axis=1)
    out = pooled_read @ cls_w + cls_b
    return (direct, out, att.reshape(B, HW * G, S),
            read.reshape(B, HW * G, F),
            jnp.transpose(ext, (0, 3, 1, 2)))


if __name__ == "__main__":
    # TODO(synk): only the Net forward is implemented; optimizer / replay /
    # storage bookkeeping in AugMem are host-side training logic, not kernels.
    key = jax.random.PRNGKey(0)
    kx, kw1, kb1, km, kw2 = jax.random.split(key, 5)

    x = jax.random.normal(kx, (B, CIN, H, W), jnp.float32)          # NCHW input
    conv_w = 0.1 * jax.random.normal(kw1, (3, 3, CIN, CFEAT), jnp.float32)
    conv_b = 0.1 * jax.random.normal(kb1, (1, CFEAT), jnp.float32)
    memory = jax.random.normal(km, (S, F), jnp.float32)             # torch.randn(S, F)
    cls_w = 0.1 * jax.random.normal(kw2, (CFEAT, NCLASS), jnp.float32)
    cls_b = jnp.zeros((1, NCLASS), jnp.float32)

    outs = augmem_forward(x, conv_w, conv_b, memory, cls_w, cls_b)
    outs = jax.block_until_ready(outs)

    refs = reference_forward(x, conv_w, conv_b, memory, cls_w, cls_b)
    names = ("direct", "out", "att_read", "read", "extracted")
    for n, a, b in zip(names, outs, refs):
        assert a.shape == b.shape, (n, a.shape, b.shape)
        assert jnp.allclose(a, b, atol=1e-2, rtol=1e-2), (
            n, float(jnp.max(jnp.abs(a - b))))

    print("KERNEL_OK")
</pallas_src>

<mosaic_0001>
module attributes {stable_mosaic.version = 11 : i64} {
  func.func @augmem_kernel(%arg0: i32, %arg1: memref<128x32xf32, #tpu.memory_space<vmem>>, %arg2: memref<32x32xf32, #tpu.memory_space<vmem>>, %arg3: memref<1x32xf32, #tpu.memory_space<vmem>>, %arg4: memref<32x64xf32, #tpu.memory_space<vmem>>, %arg5: memref<64x32xf32, #tpu.memory_space<vmem>>, %arg6: memref<64x64xf32, #tpu.memory_space<vmem>>, %arg7: memref<2x128xf32, #tpu.memory_space<vmem>>, %arg8: memref<32x128xf32, #tpu.memory_space<vmem>>, %arg9: memref<1x128xf32, #tpu.memory_space<vmem>>, %arg10: memref<128x128xf32, #tpu.memory_space<vmem>>, %arg11: memref<2x128xf32, #tpu.memory_space<vmem>>, %arg12: memref<2x128xf32, #tpu.memory_space<vmem>>) attributes {dimension_semantics = [#tpu.dimension_semantics<arbitrary>], iteration_bounds = array<i64: 1>, scalar_prefetch = 0 : i64, scratch_operands = 0 : i64, tpu.core_type = #tpu.core_type<tc>, window_params = [{pipeline_mode = #tpu.pipeline_mode<synchronous>, transform_indices = @transform_0, window_bounds = array<i64: 128, 32>}, {pipeline_mode = #tpu.pipeline_mode<synchronous>, transform_indices = @transform_1, window_bounds = array<i64: 32, 32>}, {pipeline_mode = #tpu.pipeline_mode<synchronous>, transform_indices = @transform_2, window_bounds = array<i64: 1, 32>}, {pipeline_mode = #tpu.pipeline_mode<synchronous>, transform_indices = @transform_3, window_bounds = array<i64: 32, 64>}, {pipeline_mode = #tpu.pipeline_mode<synchronous>, transform_indices = @transform_4, window_bounds = array<i64: 64, 32>}, {pipeline_mode = #tpu.pipeline_mode<synchronous>, transform_indices = @transform_5, window_bounds = array<i64: 64, 64>}, {pipeline_mode = #tpu.pipeline_mode<synchronous>, transform_indices = @transform_6, window_bounds = array<i64: 2, 128>}, {pipeline_mode = #tpu.pipeline_mode<synchronous>, transform_indices = @transform_7, window_bounds = array<i64: 32, 128>}, {pipeline_mode = #tpu.pipeline_mode<synchronous>, transform_indices = @transform_8, window_bounds = array<i64: 1, 128>}, {pipeline_mode = #tpu.pipeline_mode<synchronous>, transform_indices = @transform_9, window_bounds = array<i64: 128, 128>}, {pipeline_mode = #tpu.pipeline_mode<synchronous>, transform_indices = @transform_10, window_bounds = array<i64: 2, 128>}, {pipeline_mode = #tpu.pipeline_mode<synchronous>, transform_indices = @transform_11, window_bounds = array<i64: 2, 128>}]} {
    %c0 = arith.constant 0 : index
    %c0_0 = arith.constant 0 : index
    %0 = vector.load %arg1[%c0, %c0_0] : memref<128x32xf32, #tpu.memory_space<vmem>>, vector<128x32xf32>
    %c0_1 = arith.constant 0 : index
    %c0_2 = arith.constant 0 : index
    %1 = vector.load %arg2[%c0_1, %c0_2] : memref<32x32xf32, #tpu.memory_space<vmem>>, vector<32x32xf32>
    %cst = arith.constant dense<0.000000e+00> : vector<128x32xf32>
    %2 = tpu.matmul %0, %1, %cst {dimension_numbers = #tpu.dot_dimension_numbers<[1], [0], [0], [1], [0, 0, 1, 1], [], []>} : vector<128x32xf32>, vector<32x32xf32>, vector<128x32xf32> -> vector<128x32xf32>
    %c0_3 = arith.constant 0 : index
    %c0_4 = arith.constant 0 : index
    %3 = vector.load %arg3[%c0_3, %c0_4] : memref<1x32xf32, #tpu.memory_space<vmem>>, vector<1x32xf32>
    %4 = vector.broadcast %3 : vector<1x32xf32> to vector<128x32xf32>
    %5 = arith.addf %2, %4 : vector<128x32xf32>
    %cst_5 = arith.constant 0.000000e+00 : f32
    %6 = vector.broadcast %cst_5 : f32 to vector<128x32xf32>
    %7 = arith.maximumf %5, %6 : vector<128x32xf32>
    %c0_6 = arith.constant 0 : index
    %c0_7 = arith.constant 0 : index
    %8 = vector.load %arg4[%c0_6, %c0_7] : memref<32x64xf32, #tpu.memory_space<vmem>>, vector<32x64xf32>
    %cst_8 = arith.constant dense<0.000000e+00> : vector<128x64xf32>
    %9 = tpu.matmul %7, %8, %cst_8 {dimension_numbers = #tpu.dot_dimension_numbers<[1], [0], [0], [1], [0, 0, 1, 1], [], []>} : vector<128x32xf32>, vector<32x64xf32>, vector<128x64xf32> -> vector<128x64xf32>
    %cst_9 = arith.constant dense<0xFF800000> : vector<128xf32>
    %10 = vector.multi_reduction <maximumf>, %9, %cst_9 [1] : vector<128x64xf32> to vector<128xf32>
    %11 = vector.shape_cast %10 : vector<128xf32> to vector<128x1xf32>
    %12 = vector.broadcast %11 : vector<128x1xf32> to vector<128x64xf32>
    %13 = arith.subf %9, %12 : vector<128x64xf32>
    %14 = math.exp %13 : vector<128x64xf32>
    %c0_10 = arith.constant 0 : index
    %c0_11 = arith.constant 0 : index
    %15 = vector.load %arg6[%c0_10, %c0_11] : memref<64x64xf32, #tpu.memory_space<vmem>>, vector<64x64xf32>
    %cst_12 = arith.constant dense<0.000000e+00> : vector<128x64xf32>
    %16 = tpu.matmul %14, %15, %cst_12 {dimension_numbers = #tpu.dot_dimension_numbers<[1], [0], [0], [1], [0, 0, 1, 1], [], []>} : vector<128x64xf32>, vector<64x64xf32>, vector<128x64xf32> -> vector<128x64xf32>
    %17 = tpu.reciprocal %16 {approx = true} : vector<128x64xf32> -> vector<128x64xf32>
    %18 = arith.mulf %14, %17 : vector<128x64xf32>
    %c0_13 = arith.constant 0 : index
    %c0_14 = arith.constant 0 : index
    %19 = vector.load %arg5[%c0_13, %c0_14] : memref<64x32xf32, #tpu.memory_space<vmem>>, vector<64x32xf32>
    %cst_15 = arith.constant dense<0.000000e+00> : vector<128x32xf32>
    %20 = tpu.matmul %18, %19, %cst_15 {dimension_numbers = #tpu.dot_dimension_numbers<[1], [0], [0], [1], [0, 0, 1, 1], [], []>} : vector<128x64xf32>, vector<64x32xf32>, vector<128x32xf32> -> vector<128x32xf32>
    %c0_16 = arith.constant 0 : index
    %c0_17 = arith.constant 0 : index
    %21 = vector.load %arg7[%c0_16, %c0_17] : memref<2x128xf32, #tpu.memory_space<vmem>>, vector<2x128xf32>
    %cst_18 = arith.constant dense<0.000000e+00> : vector<2x32xf32>
    %22 = tpu.matmul %21, %7, %cst_18 {dimension_numbers = #tpu.dot_dimension_numbers<[1], [0], [0], [1], [0, 0, 1, 1], [], []>} : vector<2x128xf32>, vector<128x32xf32>, vector<2x32xf32> -> vector<2x32xf32>
    %c0_19 = arith.constant 0 : index
    %c0_20 = arith.constant 0 : index
    %23 = vector.load %arg7[%c0_19, %c0_20] : memref<2x128xf32, #tpu.memory_space<vmem>>, vector<2x128xf32>
    %cst_21 = arith.constant dense<0.000000e+00> : vector<2x32xf32>
    %24 = tpu.matmul %23, %20, %cst_21 {dimension_numbers = #tpu.dot_dimension_numbers<[1], [0], [0], [1], [0, 0, 1, 1], [], []>} : vector<2x128xf32>, vector<128x32xf32>, vector<2x32xf32> -> vector<2x32xf32>
    %c0_22 = arith.constant 0 : index
    %c0_23 = arith.constant 0 : index
    %25 = vector.load %arg8[%c0_22, %c0_23] : memref<32x128xf32, #tpu.memory_space<vmem>>, vector<32x128xf32>
    %c0_24 = arith.constant 0 : index
    %c0_25 = arith.constant 0 : index
    %26 = vector.load %arg9[%c0_24, %c0_25] : memref<1x128xf32, #tpu.memory_space<vmem>>, vector<1x128xf32>
    %cst_26 = arith.constant dense<0.000000e+00> : vector<2x128xf32>
    %27 = tpu.matmul %22, %25, %cst_26 {dimension_numbers = #tpu.dot_dimension_numbers<[1], [0], [0], [1], [0, 0, 1, 1], [], []>} : vector<2x32xf32>, vector<32x128xf32>, vector<2x128xf32> -> vector<2x128xf32>
    %28 = vector.broadcast %26 : vector<1x128xf32> to vector<2x128xf32>
    %29 = arith.addf %27, %28 : vector<2x128xf32>
    %c0_27 = arith.constant 0 : index
    %c0_28 = arith.constant 0 : index
    %30 = vector.load %arg11[%c0_27, %c0_28] : memref<2x128xf32, #tpu.memory_space<vmem>>, vector<2x128xf32>
    tpu.vector_store %arg11[%c0_27, %c0_28], %29 {strides = array<i32>} : memref<2x128xf32, #tpu.memory_space<vmem>>, vector<2x128xf32>,
    %cst_29 = arith.constant dense<0.000000e+00> : vector<2x128xf32>
    %31 = tpu.matmul %24, %25, %cst_29 {dimension_numbers = #tpu.dot_dimension_numbers<[1], [0], [0], [1], [0, 0, 1, 1], [], []>} : vector<2x32xf32>, vector<32x128xf32>, vector<2x128xf32> -> vector<2x128xf32>
    %32 = vector.broadcast %26 : vector<1x128xf32> to vector<2x128xf32>
    %33 = arith.addf %31, %32 : vector<2x128xf32>
    %c0_30 = arith.constant 0 : index
    %c0_31 = arith.constant 0 : index
    %34 = vector.load %arg12[%c0_30, %c0_31] : memref<2x128xf32, #tpu.memory_space<vmem>>, vector<2x128xf32>
    tpu.vector_store %arg12[%c0_30, %c0_31], %33 {strides = array<i32>} : memref<2x128xf32, #tpu.memory_space<vmem>>, vector<2x128xf32>,
    %c0_32 = arith.constant 0 : index
    %c0_33 = arith.constant 0 : index
    %35 = vector.load %arg10[%c0_32, %c0_33] : memref<128x128xf32, #tpu.memory_space<vmem>>, vector<128x64xf32>
    tpu.vector_store %arg10[%c0_32, %c0_33], %18 {strides = array<i32>} : memref<128x128xf32, #tpu.memory_space<vmem>>, vector<128x64xf32>,
    %c0_34 = arith.constant 0 : index
    %c64 = arith.constant 64 : index
    %36 = vector.load %arg10[%c0_34, %c64] : memref<128x128xf32, #tpu.memory_space<vmem>>, vector<128x32xf32>
    tpu.vector_store %arg10[%c0_34, %c64], %20 {strides = array<i32>} : memref<128x128xf32, #tpu.memory_space<vmem>>, vector<128x32xf32>,
    %c0_35 = arith.constant 0 : index
    %c96 = arith.constant 96 : index
    %37 = vector.load %arg10[%c0_35, %c96] : memref<128x128xf32, #tpu.memory_space<vmem>>, vector<128x32xf32>
    tpu.vector_store %arg10[%c0_35, %c96], %7 {strides = array<i32>} : memref<128x128xf32, #tpu.memory_space<vmem>>, vector<128x32xf32>,
    return
  }
  func.func @transform_0(%arg0: i32) -> (i32, i32) {
    %c0_i32 = arith.constant 0 : i32
    %c0_i32_0 = arith.constant 0 : i32
    %c0_i32_1 = arith.constant 0 : i32
    return %c0_i32, %c0_i32_0 : i32, i32
  }
  func.func @transform_1(%arg0: i32) -> (i32, i32) {
    %c0_i32 = arith.constant 0 : i32
    %c0_i32_0 = arith.constant 0 : i32
    %c0_i32_1 = arith.constant 0 : i32
    return %c0_i32, %c0_i32_0 : i32, i32
  }
  func.func @transform_2(%arg0: i32) -> (i32, i32) {
    %c0_i32 = arith.constant 0 : i32
    %c0_i32_0 = arith.constant 0 : i32
    %c0_i32_1 = arith.constant 0 : i32
    return %c0_i32, %c0_i32_0 : i32, i32
  }
  func.func @transform_3(%arg0: i32) -> (i32, i32) {
    %c0_i32 = arith.constant 0 : i32
    %c0_i32_0 = arith.constant 0 : i32
    %c0_i32_1 = arith.constant 0 : i32
    return %c0_i32, %c0_i32_0 : i32, i32
  }
  func.func @transform_4(%arg0: i32) -> (i32, i32) {
    %c0_i32 = arith.constant 0 : i32
    %c0_i32_0 = arith.constant 0 : i32
    %c0_i32_1 = arith.constant 0 : i32
    return %c0_i32, %c0_i32_0 : i32, i32
  }
  func.func @transform_5(%arg0: i32) -> (i32, i32) {
    %c0_i32 = arith.constant 0 : i32
    %c0_i32_0 = arith.constant 0 : i32
    %c0_i32_1 = arith.constant 0 : i32
    return %c0_i32, %c0_i32_0 : i32, i32
  }
  func.func @transform_6(%arg0: i32) -> (i32, i32) {
    %c0_i32 = arith.constant 0 : i32
    %c0_i32_0 = arith.constant 0 : i32
    %c0_i32_1 = arith.constant 0 : i32
    return %c0_i32, %c0_i32_0 : i32, i32
  }
  func.func @transform_7(%arg0: i32) -> (i32, i32) {
    %c0_i32 = arith.constant 0 : i32
    %c0_i32_0 = arith.constant 0 : i32
    %c0_i32_1 = arith.constant 0 : i32
    return %c0_i32, %c0_i32_0 : i32, i32
  }
  func.func @transform_8(%arg0: i32) -> (i32, i32) {
    %c0_i32 = arith.constant 0 : i32
    %c0_i32_0 = arith.constant 0 : i32
    %c0_i32_1 = arith.constant 0 : i32
    return %c0_i32, %c0_i32_0 : i32, i32
  }
  func.func @transform_9(%arg0: i32) -> (i32, i32) {
    %c0_i32 = arith.constant 0 : i32
    %c0_i32_0 = arith.constant 0 : i32
    %c0_i32_1 = arith.constant 0 : i32
    return %c0_i32, %c0_i32_0 : i32, i32
  }
  func.func @transform_10(%arg0: i32) -> (i32, i32) {
    %c0_i32 = arith.constant 0 : i32
    %c0_i32_0 = arith.constant 0 : i32
    %c0_i32_1 = arith.constant 0 : i32
    return %c0_i32, %c0_i32_0 : i32, i32
  }
  func.func @transform_11(%arg0: i32) -> (i32, i32) {
    %c0_i32 = arith.constant 0 : i32
    %c0_i32_0 = arith.constant 0 : i32
    %c0_i32_1 = arith.constant 0 : i32
    return %c0_i32, %c0_i32_0 : i32, i32
  }
}

</mosaic_0001>

<llo_original>
// kernel: augmem_forward.1
$region0: #{augmem_forward.1}
  #allocation0 [shape = 'u32[]', space=smem, size = 0x4, offset = 0x4, fixed_abs, tag = 'smem constant byte address 0x4 - core index']
  #allocation1 [shape = 'u32[72,128]{1,0:T(1,128)}', space=vmem, size = 0x9000, scoped, tag = 'internal scratch']
  %s0 = inlined_call_operand.vmem [shape: f32[128,32], index: 0, kind: input, shape index: {}]
  %s1 = inlined_call_operand.vmem [shape: f32[32,32], index: 1, kind: input, shape index: {}]
  %s2 = inlined_call_operand.vmem [shape: f32[1,32], index: 2, kind: input, shape index: {}]
  %s3 = inlined_call_operand.vmem [shape: f32[32,64], index: 3, kind: input, shape index: {}]
  %s4 = inlined_call_operand.vmem [shape: f32[64,32], index: 4, kind: input, shape index: {}]
  %s5 = inlined_call_operand.vmem [shape: f32[64,64], index: 5, kind: input, shape index: {}]
  %s6 = inlined_call_operand.vmem [shape: f32[2,128], index: 6, kind: input, shape index: {}]
  %s7 = inlined_call_operand.vmem [shape: f32[32,128], index: 7, kind: input, shape index: {}]
  %s8 = inlined_call_operand.vmem [shape: f32[1,128], index: 8, kind: input, shape index: {}]
  %s9 = inlined_call_operand.vmem [shape: f32[128,128], index: 9, kind: output, shape index: {0}]
  %s10 = inlined_call_operand.hbm [shape: f32[2,128], index: 10, kind: output, shape index: {1}]
  %s11 = inlined_call_operand.hbm [shape: f32[2,128], index: 11, kind: output, shape index: {2}]
  %12 = xla_tuple %s9, %s10, %s11
  %s13 = sld [smem:[#allocation0]]
  $region62: #{augmem_forward.1} parent=0
    _
  %s15 = ssub.s32 1, %s13
  %s16 = scalar_select 0, %s15, %s13
  $region1: #{augmem_forward.1} parent=0
    #allocation2 [shape = 'u8[1024]{0}', space=vmem, size = 0x400, scoped, tag = 'output window, operand 1, single buffered']
    #allocation3 [shape = 's32[1]{0}', space=sflag, size = 0x4, scoped, tag = 'scoped memory for augmem_forward.1']
    #allocation4 [shape = 'u8[1024]{0}', space=vmem, size = 0x400, scoped, tag = 'output window, operand 2, single buffered']
    #allocation5 [shape = 's32[1]{0}', space=sflag, size = 0x4, scoped, tag = 'scoped memory for augmem_forward.1']
    %17 = vsyncpa [#allocation3], 0
    %18 = vsyncpa [#allocation5], 0
    // Predicated region
    $region2: #{augmem_forward.1} parent=1 // pred_check
      _
    $region3: #{augmem_forward.1} parent=1 // pred_check_branch
      %20 = sbr.rel (0) target = $region5
    $region4: #{augmem_forward.1} parent=1 // pred_region
      _
    $region5: #{augmem_forward.1} parent=1 // pred_fallthru
      _
    // Predicated region
    $region6: #{augmem_forward.1} parent=1 // pred_check
      _
    $region7: #{augmem_forward.1} parent=1 // pred_check_branch
      %22 = sbr.rel (0) target = $region9
    $region8: #{augmem_forward.1} parent=1 // pred_region
      _
    $region9: #{augmem_forward.1} parent=1 // pred_fallthru
      _
    // Predicated region
    $region10: #{augmem_forward.1} parent=1 // pred_check
      _
    $region11: #{augmem_forward.1} parent=1 // pred_check_branch
      %24 = sbr.rel (0) target = $region13
    $region12: #{augmem_forward.1} parent=1 // pred_region
      _
    $region13: #{augmem_forward.1} parent=1 // pred_fallthru
      _
    // Predicated region
    $region14: #{augmem_forward.1} parent=1 // pred_check
      _
    $region15: #{augmem_forward.1} parent=1 // pred_check_branch
      %26 = sbr.rel (0) target = $region17
    $region16: #{augmem_forward.1} parent=1 // pred_region
      _
    $region17: #{augmem_forward.1} parent=1 // pred_fallthru
      _
    // Predicated region
    $region18: #{augmem_forward.1} parent=1 // pred_check
      _
    $region19: #{augmem_forward.1} parent=1 // pred_check_branch
      %28 = sbr.rel (0) target = $region21
    $region20: #{augmem_forward.1} parent=1 // pred_region
      _
    $region21: #{augmem_forward.1} parent=1 // pred_fallthru
      _
    // Predicated region
    $region22: #{augmem_forward.1} parent=1 // pred_check
      _
    $region23: #{augmem_forward.1} parent=1 // pred_check_branch
      %30 = sbr.rel (0) target = $region25
    $region24: #{augmem_forward.1} parent=1 // pred_region
      _
    $region25: #{augmem_forward.1} parent=1 // pred_fallthru
      _
    // Predicated region
    $region26: #{augmem_forward.1} parent=1 // pred_check
      _
    $region27: #{augmem_forward.1} parent=1 // pred_check_branch
      %32 = sbr.rel (0) target = $region29
    $region28: #{augmem_forward.1} parent=1 // pred_region
      _
    $region29: #{augmem_forward.1} parent=1 // pred_fallthru
      _
    // Predicated region
    $region30: #{augmem_forward.1} parent=1 // pred_check
      _
    $region31: #{augmem_forward.1} parent=1 // pred_check_branch
      %34 = sbr.rel (0) target = $region33
    $region32: #{augmem_forward.1} parent=1 // pred_region
      _
    $region33: #{augmem_forward.1} parent=1 // pred_fallthru
      _
    // Predicated region
    $region34: #{augmem_forward.1} parent=1 // pred_check
      _
    $region35: #{augmem_forward.1} parent=1 // pred_check_branch
      %36 = sbr.rel (0) target = $region37
    $region36: #{augmem_forward.1} parent=1 // pred_region
      _
    $region37: #{augmem_forward.1} parent=1 // pred_fallthru
      _
    %v37 = vld [vmem:[%s0] sm:$0xff]
    %v38 = vld [vmem:[%s0 + $0x8] sm:$0xff]
    %v39 = vld [vmem:[%s0 + $0x10] sm:$0xff]
    %v40 = vld [vmem:[%s0 + $0x18] sm:$0xff]
    %v41 = vld [vmem:[%s0 + $0x20] sm:$0xff]
    %v42 = vld [vmem:[%s0 + $0x28] sm:$0xff]
    %v43 = vld [vmem:[%s0 + $0x30] sm:$0xff]
    %v44 = vld [vmem:[%s0 + $0x38] sm:$0xff]
    %v45 = vld [vmem:[%s0 + $0x40] sm:$0xff]
    %v46 = vld [vmem:[%s0 + $0x48] sm:$0xff]
    %v47 = vld [vmem:[%s0 + $0x50] sm:$0xff]
    %v48 = vld [vmem:[%s0 + $0x58] sm:$0xff]
    %v49 = vld [vmem:[%s0 + $0x60] sm:$0xff]
    %v50 = vld [vmem:[%s0 + $0x68] sm:$0xff]
    %v51 = vld [vmem:[%s0 + $0x70] sm:$0xff]
    %v52 = vld [vmem:[%s0 + $0x78] sm:$0xff]
    %v53 = vld [vmem:[%s1] sm:$0xff]
    %v54 = vld [vmem:[%s1 + $0x8] sm:$0xff]
    %v55 = vld [vmem:[%s1 + $0x10] sm:$0xff]
    %v56 = vld [vmem:[%s1 + $0x18] sm:$0xff]
    %v57 = vld [vmem:[%s2] sm:$0x1]
    %v59 = vperm.slane %v57, 0
    %vm61 = vcmask 261120
    %v63 = vsel %vm61, %v37, 0
    %v66 = vsel %vm61, %v38, 0
    %v69 = vsel %vm61, %v39, 0
    %v72 = vsel %vm61, %v40, 0
    %v75 = vsel %vm61, %v41, 0
    %v78 = vsel %vm61, %v42, 0
    %v81 = vsel %vm61, %v43, 0
    %v84 = vsel %vm61, %v44, 0
    %v87 = vsel %vm61, %v45, 0
    %v90 = vsel %vm61, %v46, 0
    %v93 = vsel %vm61, %v47, 0
    %v96 = vsel %vm61, %v48, 0
    %v99 = vsel %vm61, %v49, 0
    %v102 = vsel %vm61, %v50, 0
    %v105 = vsel %vm61, %v51, 0
    %v108 = vsel %vm61, %v52, 0
    %110 = vmatpush.msra.mxu0 0.0
    %111 = vmatpush.msra.mxu0 0.0
    %112 = vmatpush.msra.mxu0 0.0
    %113 = vmatpush.msra.mxu0 0.0
    %114 = vmatpush.msra.mxu0 0.0
    %115 = vmatpush.msra.mxu0 0.0
    %116 = vmatpush.msra.mxu0 0.0
    %117 = vmatpush.msra.mxu0 0.0
    %118 = vmatpush.msra.mxu0 0.0
    %119 = vmatpush.msra.mxu0 0.0
    %120 = vmatpush.msra.mxu0 0.0
    %121 = vmatpush.msra.mxu0 0.0
    %122 = vmatpush.msra.mxu0 %v56
    %123 = vmatpush.msra.mxu0 %v55
    %124 = vmatpush.msra.mxu0 %v54
    %125 = vmatpush.msra.mxu0 %v53
    %126 = vmatmul.f32.gmra.mxu0 %v63
    %v127 = vpop.f32.mrf.mxu0
    %v128 = vadd.f32 %v59, %v127
    %129 = vmatmul.f32.gmra.mxu0 %v66
    %v130 = vpop.f32.mrf.mxu0
    %v131 = vadd.f32 %v59, %v130
    %132 = vmatmul.f32.gmra.mxu0 %v69
    %v133 = vpop.f32.mrf.mxu0
    %v134 = vadd.f32 %v59, %v133
    %135 = vmatmul.f32.gmra.mxu0 %v72
    %v136 = vpop.f32.mrf.mxu0
    %v137 = vadd.f32 %v59, %v136
    %138 = vmatmul.f32.gmra.mxu0 %v75
    %v139 = vpop.f32.mrf.mxu0
    %v140 = vadd.f32 %v59, %v139
    %141 = vmatmul.f32.gmra.mxu0 %v78
    %v142 = vpop.f32.mrf.mxu0
    %v143 = vadd.f32 %v59, %v142
    %144 = vmatmul.f32.gmra.mxu0 %v81
    %v145 = vpop.f32.mrf.mxu0
    %v146 = vadd.f32 %v59, %v145
    %147 = vmatmul.f32.gmra.mxu0 %v84
    %v148 = vpop.f32.mrf.mxu0
    %v149 = vadd.f32 %v59, %v148
    %150 = vmatmul.f32.gmra.mxu0 %v87
    %v151 = vpop.f32.mrf.mxu0
    %v152 = vadd.f32 %v59, %v151
    %153 = vmatmul.f32.gmra.mxu0 %v90
    %v154 = vpop.f32.mrf.mxu0
    %v155 = vadd.f32 %v59, %v154
    %156 = vmatmul.f32.gmra.mxu0 %v93
    %v157 = vpop.f32.mrf.mxu0
    %v158 = vadd.f32 %v59, %v157
    %159 = vmatmul.f32.gmra.mxu0 %v96
    %v160 = vpop.f32.mrf.mxu0
    %v161 = vadd.f32 %v59, %v160
    %162 = vmatmul.f32.gmra.mxu0 %v99
    %v163 = vpop.f32.mrf.mxu0
    %v164 = vadd.f32 %v59, %v163
    %165 = vmatmul.f32.gmra.mxu0 %v102
    %v166 = vpop.f32.mrf.mxu0
    %v167 = vadd.f32 %v59, %v166
    %168 = vmatmul.f32.gmra.mxu0 %v105
    %v169 = vpop.f32.mrf.mxu0
    %v170 = vadd.f32 %v59, %v169
    %171 = vmatmul.f32.gmra.mxu0 %v108
    %v172 = vpop.f32.mrf.mxu0
    %v173 = vadd.f32 %v59, %v172
    %174 = vdwg.mxu0
    %v175 = vmax.f32 %v128, 0.0
    %v176 = vmax.f32 %v131, 0.0
    %v177 = vmax.f32 %v134, 0.0
    %v178 = vmax.f32 %v137, 0.0
    %v179 = vmax.f32 %v140, 0.0
    %v180 = vmax.f32 %v143, 0.0
    %v181 = vmax.f32 %v146, 0.0
    %v182 = vmax.f32 %v149, 0.0
    %v183 = vmax.f32 %v152, 0.0
    %v184 = vmax.f32 %v155, 0.0
    %v185 = vmax.f32 %v158, 0.0
    %v186 = vmax.f32 %v161, 0.0
    %v187 = vmax.f32 %v164, 0.0
    %v188 = vmax.f32 %v167, 0.0
    %v189 = vmax.f32 %v170, 0.0
    %v190 = vmax.f32 %v173, 0.0
    %v191 = vld [vmem:[%s3] sm:$0xff]
    %v192 = vld [vmem:[%s3 + $0x8] sm:$0xff]
    %v193 = vld [vmem:[%s3 + $0x10] sm:$0xff]
    %v194 = vld [vmem:[%s3 + $0x18] sm:$0xff]
    %v196 = vsel %vm61, %v175, 0
    %v199 = vsel %vm61, %v176, 0
    %v202 = vsel %vm61, %v177, 0
    %v205 = vsel %vm61, %v178, 0
    %v208 = vsel %vm61, %v179, 0
    %v211 = vsel %vm61, %v180, 0
    %v214 = vsel %vm61, %v181, 0
    %v217 = vsel %vm61, %v182, 0
    %v220 = vsel %vm61, %v183, 0
    %v223 = vsel %vm61, %v184, 0
    %v226 = vsel %vm61, %v185, 0
    %v229 = vsel %vm61, %v186, 0
    %v232 = vsel %vm61, %v187, 0
    %v235 = vsel %vm61, %v188, 0
    %v238 = vsel %vm61, %v189, 0
    %v241 = vsel %vm61, %v190, 0
    %243 = vmatpush.msra.mxu0 0.0
    %244 = vmatpush.msra.mxu0 0.0
    %245 = vmatpush.msra.mxu0 0.0
    %246 = vmatpush.msra.mxu0 0.0
    %247 = vmatpush.msra.mxu0 0.0
    %248 = vmatpush.msra.mxu0 0.0
    %249 = vmatpush.msra.mxu0 0.0
    %250 = vmatpush.msra.mxu0 0.0
    %251 = vmatpush.msra.mxu0 0.0
    %252 = vmatpush.msra.mxu0 0.0
    %253 = vmatpush.msra.mxu0 0.0
    %254 = vmatpush.msra.mxu0 0.0
    %255 = vmatpush.msra.mxu0 %v194
    %256 = vmatpush.msra.mxu0 %v193
    %257 = vmatpush.msra.mxu0 %v192
    %258 = vmatpush.msra.mxu0 %v191
    %259 = vmatmul.f32.gmra.mxu0 %v196
    %v260 = vpop.f32.mrf.mxu0
    %v261 = vadd.f32 0.0, %v260
    %262 = vmatmul.f32.gmra.mxu0 %v199
    %v263 = vpop.f32.mrf.mxu0
    %v264 = vadd.f32 0.0, %v263
    %265 = vmatmul.f32.gmra.mxu0 %v202
    %v266 = vpop.f32.mrf.mxu0
    %v267 = vadd.f32 0.0, %v266
    %268 = vmatmul.f32.gmra.mxu0 %v205
    %v269 = vpop.f32.mrf.mxu0
    %v270 = vadd.f32 0.0, %v269
    %271 = vmatmul.f32.gmra.mxu0 %v208
    %v272 = vpop.f32.mrf.mxu0
    %v273 = vadd.f32 0.0, %v272
    %274 = vmatmul.f32.gmra.mxu0 %v211
    %v275 = vpop.f32.mrf.mxu0
    %v276 = vadd.f32 0.0, %v275
    %277 = vmatmul.f32.gmra.mxu0 %v214
    %v278 = vpop.f32.mrf.mxu0
    %v279 = vadd.f32 0.0, %v278
    %280 = vmatmul.f32.gmra.mxu0 %v217
    %v281 = vpop.f32.mrf.mxu0
    %v282 = vadd.f32 0.0, %v281
    %283 = vmatmul.f32.gmra.mxu0 %v220
    %v284 = vpop.f32.mrf.mxu0
    %v285 = vadd.f32 0.0, %v284
    %286 = vmatmul.f32.gmra.mxu0 %v223
    %v287 = vpop.f32.mrf.mxu0
    %v288 = vadd.f32 0.0, %v287
    %289 = vmatmul.f32.gmra.mxu0 %v226
    %v290 = vpop.f32.mrf.mxu0
    %v291 = vadd.f32 0.0, %v290
    %292 = vmatmul.f32.gmra.mxu0 %v229
    %v293 = vpop.f32.mrf.mxu0
    %v294 = vadd.f32 0.0, %v293
    %295 = vmatmul.f32.gmra.mxu0 %v232
    %v296 = vpop.f32.mrf.mxu0
    %v297 = vadd.f32 0.0, %v296
    %298 = vmatmul.f32.gmra.mxu0 %v235
    %v299 = vpop.f32.mrf.mxu0
    %v300 = vadd.f32 0.0, %v299
    %301 = vmatmul.f32.gmra.mxu0 %v238
    %v302 = vpop.f32.mrf.mxu0
    %v303 = vadd.f32 0.0, %v302
    %304 = vmatmul.f32.gmra.mxu0 %v241
    %v305 = vpop.f32.mrf.mxu0
    %v306 = vadd.f32 0.0, %v305
    %307 = vdwg.mxu0
    %vm308 = vcmask 523264
    %v309 = vsel %vm308, %v261, -inf
    %310 = vmax.xlane.f32.xlu0 %v309
    %v311 = vpop.xlane.xlu0 %310
    %v312 = vsel %vm308, %v264, -inf
    %313 = vmax.xlane.f32.xlu0 %v312
    %v314 = vpop.xlane.xlu0 %313
    %v315 = vsel %vm308, %v267, -inf
    %316 = vmax.xlane.f32.xlu0 %v315
    %v317 = vpop.xlane.xlu0 %316
    %v318 = vsel %vm308, %v270, -inf
    %319 = vmax.xlane.f32.xlu0 %v318
    %v320 = vpop.xlane.xlu0 %319
    %v321 = vsel %vm308, %v273, -inf
    %322 = vmax.xlane.f32.xlu0 %v321
    %v323 = vpop.xlane.xlu0 %322
    %v324 = vsel %vm308, %v276, -inf
    %325 = vmax.xlane.f32.xlu0 %v324
    %v326 = vpop.xlane.xlu0 %325
    %v327 = vsel %vm308, %v279, -inf
    %328 = vmax.xlane.f32.xlu0 %v327
    %v329 = vpop.xlane.xlu0 %328
    %v330 = vsel %vm308, %v282, -inf
    %331 = vmax.xlane.f32.xlu0 %v330
    %v332 = vpop.xlane.xlu0 %331
    %v333 = vsel %vm308, %v285, -inf
    %334 = vmax.xlane.f32.xlu0 %v333
    %v335 = vpop.xlane.xlu0 %334
    %v336 = vsel %vm308, %v288, -inf
    %337 = vmax.xlane.f32.xlu0 %v336
    %v338 = vpop.xlane.xlu0 %337
    %v339 = vsel %vm308, %v291, -inf
    %340 = vmax.xlane.f32.xlu0 %v339
    %v341 = vpop.xlane.xlu0 %340
    %v342 = vsel %vm308, %v294, -inf
    %343 = vmax.xlane.f32.xlu0 %v342
    %v344 = vpop.xlane.xlu0 %343
    %v345 = vsel %vm308, %v297, -inf
    %346 = vmax.xlane.f32.xlu0 %v345
    %v347 = vpop.xlane.xlu0 %346
    %v348 = vsel %vm308, %v300, -inf
    %349 = vmax.xlane.f32.xlu0 %v348
    %v350 = vpop.xlane.xlu0 %349
    %v351 = vsel %vm308, %v303, -inf
    %352 = vmax.xlane.f32.xlu0 %v351
    %v353 = vpop.xlane.xlu0 %352
    %v354 = vsel %vm308, %v306, -inf
    %355 = vmax.xlane.f32.xlu0 %v354
    %v356 = vpop.xlane.xlu0 %355
    %v357 = vsub.f32 %v261, %v311
    %v358 = vsub.f32 %v264, %v314
    %v359 = vsub.f32 %v267, %v317
    %v360 = vsub.f32 %v270, %v320
    %v361 = vsub.f32 %v273, %v323
    %v362 = vsub.f32 %v276, %v326
    %v363 = vsub.f32 %v279, %v329
    %v364 = vsub.f32 %v282, %v332
    %v365 = vsub.f32 %v285, %v335
    %v366 = vsub.f32 %v288, %v338
    %v367 = vsub.f32 %v291, %v341
    %v368 = vsub.f32 %v294, %v344
    %v369 = vsub.f32 %v297, %v347
    %v370 = vsub.f32 %v300, %v350
    %v371 = vsub.f32 %v303, %v353
    %v372 = vsub.f32 %v306, %v356
    %v373 = vmul.f32 %v357, 1.442695
    %v374 = vpow.pop %v373
    %v375 = vmul.f32 %v358, 1.442695
    %v376 = vpow.pop %v375
    %v377 = vmul.f32 %v359, 1.442695
    %v378 = vpow.pop %v377
    %v379 = vmul.f32 %v360, 1.442695
    %v380 = vpow.pop %v379
    %v381 = vmul.f32 %v361, 1.442695
    %v382 = vpow.pop %v381
    %v383 = vmul.f32 %v362, 1.442695
    %v384 = vpow.pop %v383
    %v385 = vmul.f32 %v363, 1.442695
    %v386 = vpow.pop %v385
    %v387 = vmul.f32 %v364, 1.442695
    %v388 = vpow.pop %v387
    %v389 = vmul.f32 %v365, 1.442695
    %v390 = vpow.pop %v389
    %v391 = vmul.f32 %v366, 1.442695
    %v392 = vpow.pop %v391
    %v393 = vmul.f32 %v367, 1.442695
    %v394 = vpow.pop %v393
    %v395 = vmul.f32 %v368, 1.442695
    %v396 = vpow.pop %v395
    %v397 = vmul.f32 %v369, 1.442695
    %v398 = vpow.pop %v397
    %v399 = vmul.f32 %v370, 1.442695
    %v400 = vpow.pop %v399
    %v401 = vmul.f32 %v371, 1.442695
    %v402 = vpow.pop %v401
    %v403 = vmul.f32 %v372, 1.442695
    %v404 = vpow.pop %v403
    %v405 = vld [vmem:[%s5] sm:$0xff]
    %v406 = vld [vmem:[%s5 + $0x8] sm:$0xff]
    %v407 = vld [vmem:[%s5 + $0x10] sm:$0xff]
    %v408 = vld [vmem:[%s5 + $0x18] sm:$0xff]
    %v409 = vld [vmem:[%s5 + $0x20] sm:$0xff]
    %v410 = vld [vmem:[%s5 + $0x28] sm:$0xff]
    %v411 = vld [vmem:[%s5 + $0x30] sm:$0xff]
    %v412 = vld [vmem:[%s5 + $0x38] sm:$0xff]
    %v414 = vsel %vm308, %v374, 0
    %v417 = vsel %vm308, %v376, 0
    %v420 = vsel %vm308, %v378, 0
    %v423 = vsel %vm308, %v380, 0
    %v426 = vsel %vm308, %v382, 0
    %v429 = vsel %vm308, %v384, 0
    %v432 = vsel %vm308, %v386, 0
    %v435 = vsel %vm308, %v388, 0
    %v438 = vsel %vm308, %v390, 0
    %v441 = vsel %vm308, %v392, 0
    %v444 = vsel %vm308, %v394, 0
    %v447 = vsel %vm308, %v396, 0
    %v450 = vsel %vm308, %v398, 0
    %v453 = vsel %vm308, %v400, 0
    %v456 = vsel %vm308, %v402, 0
    %v459 = vsel %vm308, %v404, 0
    %461 = vmatpush.msra.mxu0 0.0
    %462 = vmatpush.msra.mxu0 0.0
    %463 = vmatpush.msra.mxu0 0.0
    %464 = vmatpush.msra.mxu0 0.0
    %465 = vmatpush.msra.mxu0 0.0
    %466 = vmatpush.msra.mxu0 0.0
    %467 = vmatpush.msra.mxu0 0.0
    %468 = vmatpush.msra.mxu0 0.0
    %469 = vmatpush.msra.mxu0 %v412
    %470 = vmatpush.msra.mxu0 %v411
    %471 = vmatpush.msra.mxu0 %v410
    %472 = vmatpush.msra.mxu0 %v409
    %473 = vmatpush.msra.mxu0 %v408
    %474 = vmatpush.msra.mxu0 %v407
    %475 = vmatpush.msra.mxu0 %v406
    %476 = vmatpush.msra.mxu0 %v405
    %477 = vmatmul.f32.gmra.mxu0 %v414
    %v478 = vpop.f32.mrf.mxu0
    %v479 = vadd.f32 0.0, %v478
    %480 = vmatmul.f32.gmra.mxu0 %v417
    %v481 = vpop.f32.mrf.mxu0
    %v482 = vadd.f32 0.0, %v481
    %483 = vmatmul.f32.gmra.mxu0 %v420
    %v484 = vpop.f32.mrf.mxu0
    %v485 = vadd.f32 0.0, %v484
    %486 = vmatmul.f32.gmra.mxu0 %v423
    %v487 = vpop.f32.mrf.mxu0
    %v488 = vadd.f32 0.0, %v487
    %489 = vmatmul.f32.gmra.mxu0 %v426
    %v490 = vpop.f32.mrf.mxu0
    %v491 = vadd.f32 0.0, %v490
    %492 = vmatmul.f32.gmra.mxu0 %v429
    %v493 = vpop.f32.mrf.mxu0
    %v494 = vadd.f32 0.0, %v493
    %495 = vmatmul.f32.gmra.mxu0 %v432
    %v496 = vpop.f32.mrf.mxu0
    %v497 = vadd.f32 0.0, %v496
    %498 = vmatmul.f32.gmra.mxu0 %v435
    %v499 = vpop.f32.mrf.mxu0
    %v500 = vadd.f32 0.0, %v499
    %501 = vmatmul.f32.gmra.mxu0 %v438
    %v502 = vpop.f32.mrf.mxu0
    %v503 = vadd.f32 0.0, %v502
    %504 = vmatmul.f32.gmra.mxu0 %v441
    %v505 = vpop.f32.mrf.mxu0
    %v506 = vadd.f32 0.0, %v505
    %507 = vmatmul.f32.gmra.mxu0 %v444
    %v508 = vpop.f32.mrf.mxu0
    %v509 = vadd.f32 0.0, %v508
    %510 = vmatmul.f32.gmra.mxu0 %v447
    %v511 = vpop.f32.mrf.mxu0
    %v512 = vadd.f32 0.0, %v511
    %513 = vmatmul.f32.gmra.mxu0 %v450
    %v514 = vpop.f32.mrf.mxu0
    %v515 = vadd.f32 0.0, %v514
    %516 = vmatmul.f32.gmra.mxu0 %v453
    %v517 = vpop.f32.mrf.mxu0
    %v518 = vadd.f32 0.0, %v517
    %519 = vmatmul.f32.gmra.mxu0 %v456
    %v520 = vpop.f32.mrf.mxu0
    %v521 = vadd.f32 0.0, %v520
    %522 = vmatmul.f32.gmra.mxu0 %v459
    %v523 = vpop.f32.mrf.mxu0
    %v524 = vadd.f32 0.0, %v523
    %525 = vdwg.mxu0
    %v526 = vrcp.pop %v479
    %v527 = vrcp.pop %v482
    %v528 = vrcp.pop %v485
    %v529 = vrcp.pop %v488
    %v530 = vrcp.pop %v491
    %v531 = vrcp.pop %v494
    %v532 = vrcp.pop %v497
    %v533 = vrcp.pop %v500
    %v534 = vrcp.pop %v503
    %v535 = vrcp.pop %v506
    %v536 = vrcp.pop %v509
    %v537 = vrcp.pop %v512
    %v538 = vrcp.pop %v515
    %v539 = vrcp.pop %v518
    %v540 = vrcp.pop %v521
    %v541 = vrcp.pop %v524
    %v542 = vmul.f32 %v374, %v526
    %v543 = vmul.f32 %v376, %v527
    %v544 = vmul.f32 %v378, %v528
    %v545 = vmul.f32 %v380, %v529
    %v546 = vmul.f32 %v382, %v530
    %v547 = vmul.f32 %v384, %v531
    %v548 = vmul.f32 %v386, %v532
    %v549 = vmul.f32 %v388, %v533
    %v550 = vmul.f32 %v390, %v534
    %v551 = vmul.f32 %v392, %v535
    %v552 = vmul.f32 %v394, %v536
    %v553 = vmul.f32 %v396, %v537
    %v554 = vmul.f32 %v398, %v538
    %v555 = vmul.f32 %v400, %v539
    %v556 = vmul.f32 %v402, %v540
    %v557 = vmul.f32 %v404, %v541
    %v558 = vld [vmem:[%s4] sm:$0xff]
    %v559 = vld [vmem:[%s4 + $0x8] sm:$0xff]
    %v560 = vld [vmem:[%s4 + $0x10] sm:$0xff]
    %v561 = vld [vmem:[%s4 + $0x18] sm:$0xff]
    %v562 = vld [vmem:[%s4 + $0x20] sm:$0xff]
    %v563 = vld [vmem:[%s4 + $0x28] sm:$0xff]
    %v564 = vld [vmem:[%s4 + $0x30] sm:$0xff]
    %v565 = vld [vmem:[%s4 + $0x38] sm:$0xff]
    %v567 = vsel %vm308, %v542, 0
    %v570 = vsel %vm308, %v543, 0
    %v573 = vsel %vm308, %v544, 0
    %v576 = vsel %vm308, %v545, 0
    %v579 = vsel %vm308, %v546, 0
    %v582 = vsel %vm308, %v547, 0
    %v585 = vsel %vm308, %v548, 0
    %v588 = vsel %vm308, %v549, 0
    %v591 = vsel %vm308, %v550, 0
    %v594 = vsel %vm308, %v551, 0
    %v597 = vsel %vm308, %v552, 0
    %v600 = vsel %vm308, %v553, 0
    %v603 = vsel %vm308, %v554, 0
    %v606 = vsel %vm308, %v555, 0
    %v609 = vsel %vm308, %v556, 0
    %v612 = vsel %vm308, %v557, 0
    %614 = vmatpush.msra.mxu0 0.0
    %615 = vmatpush.msra.mxu0 0.0
    %616 = vmatpush.msra.mxu0 0.0
    %617 = vmatpush.msra.mxu0 0.0
    %618 = vmatpush.msra.mxu0 0.0
    %619 = vmatpush.msra.mxu0 0.0
    %620 = vmatpush.msra.mxu0 0.0
    %621 = vmatpush.msra.mxu0 0.0
    %622 = vmatpush.msra.mxu0 %v565
    %623 = vmatpush.msra.mxu0 %v564
    %624 = vmatpush.msra.mxu0 %v563
    %625 = vmatpush.msra.mxu0 %v562
    %626 = vmatpush.msra.mxu0 %v561
    %627 = vmatpush.msra.mxu0 %v560
    %628 = vmatpush.msra.mxu0 %v559
    %629 = vmatpush.msra.mxu0 %v558
    %630 = vmatmul.f32.gmra.mxu0 %v567
    %v631 = vpop.f32.mrf.mxu0
    %v632 = vadd.f32 0.0, %v631
    %633 = vmatmul.f32.gmra.mxu0 %v570
    %v634 = vpop.f32.mrf.mxu0
    %v635 = vadd.f32 0.0, %v634
    %636 = vmatmul.f32.gmra.mxu0 %v573
    %v637 = vpop.f32.mrf.mxu0
    %v638 = vadd.f32 0.0, %v637
    %639 = vmatmul.f32.gmra.mxu0 %v576
    %v640 = vpop.f32.mrf.mxu0
    %v641 = vadd.f32 0.0, %v640
    %642 = vmatmul.f32.gmra.mxu0 %v579
    %v643 = vpop.f32.mrf.mxu0
    %v644 = vadd.f32 0.0, %v643
    %645 = vmatmul.f32.gmra.mxu0 %v582
    %v646 = vpop.f32.mrf.mxu0
    %v647 = vadd.f32 0.0, %v646
    %648 = vmatmul.f32.gmra.mxu0 %v585
    %v649 = vpop.f32.mrf.mxu0
    %v650 = vadd.f32 0.0, %v649
    %651 = vmatmul.f32.gmra.mxu0 %v588
    %v652 = vpop.f32.mrf.mxu0
    %v653 = vadd.f32 0.0, %v652
    %654 = vmatmul.f32.gmra.mxu0 %v591
    %v655 = vpop.f32.mrf.mxu0
    %v656 = vadd.f32 0.0, %v655
    %657 = vmatmul.f32.gmra.mxu0 %v594
    %v658 = vpop.f32.mrf.mxu0
    %v659 = vadd.f32 0.0, %v658
    %660 = vmatmul.f32.gmra.mxu0 %v597
    %v661 = vpop.f32.mrf.mxu0
    %v662 = vadd.f32 0.0, %v661
    %663 = vmatmul.f32.gmra.mxu0 %v600
    %v664 = vpop.f32.mrf.mxu0
    %v665 = vadd.f32 0.0, %v664
    %666 = vmatmul.f32.gmra.mxu0 %v603
    %v667 = vpop.f32.mrf.mxu0
    %v668 = vadd.f32 0.0, %v667
    %669 = vmatmul.f32.gmra.mxu0 %v606
    %v670 = vpop.f32.mrf.mxu0
    %v671 = vadd.f32 0.0, %v670
    %672 = vmatmul.f32.gmra.mxu0 %v609
    %v673 = vpop.f32.mrf.mxu0
    %v674 = vadd.f32 0.0, %v673
    %675 = vmatmul.f32.gmra.mxu0 %v612
    %v676 = vpop.f32.mrf.mxu0
    %v677 = vadd.f32 0.0, %v676
    %678 = vdwg.mxu0
    %v679 = vld [vmem:[%s6] sm:$0x3]
    %680 = vmatpush.msra.mxu0 %v190
    %681 = vmatpush.msra.mxu0 %v189
    %682 = vmatpush.msra.mxu0 %v188
    %683 = vmatpush.msra.mxu0 %v187
    %684 = vmatpush.msra.mxu0 %v186
    %685 = vmatpush.msra.mxu0 %v185
    %686 = vmatpush.msra.mxu0 %v184
    %687 = vmatpush.msra.mxu0 %v183
    %688 = vmatpush.msra.mxu0 %v182
    %689 = vmatpush.msra.mxu0 %v181
    %690 = vmatpush.msra.mxu0 %v180
    %691 = vmatpush.msra.mxu0 %v179
    %692 = vmatpush.msra.mxu0 %v178
    %693 = vmatpush.msra.mxu0 %v177
    %694 = vmatpush.msra.mxu0 %v176
    %695 = vmatpush.msra.mxu0 %v175
    %696 = vmatmul.f32.gmra.mxu0 %v679
    %v697 = vpop.f32.mrf.mxu0
    %v698 = vadd.f32 0.0, %v697
    %699 = vdwg.mxu0
    %700 = vmatpush.msra.mxu0 %v677
    %701 = vmatpush.msra.mxu0 %v674
    %702 = vmatpush.msra.mxu0 %v671
    %703 = vmatpush.msra.mxu0 %v668
    %704 = vmatpush.msra.mxu0 %v665
    %705 = vmatpush.msra.mxu0 %v662
    %706 = vmatpush.msra.mxu0 %v659
    %707 = vmatpush.msra.mxu0 %v656
    %708 = vmatpush.msra.mxu0 %v653
    %709 = vmatpush.msra.mxu0 %v650
    %710 = vmatpush.msra.mxu0 %v647
    %711 = vmatpush.msra.mxu0 %v644
    %712 = vmatpush.msra.mxu0 %v641
    %713 = vmatpush.msra.mxu0 %v638
    %714 = vmatpush.msra.mxu0 %v635
    %715 = vmatpush.msra.mxu0 %v632
    %716 = vmatmul.f32.gmra.mxu0 %v679
    %v717 = vpop.f32.mrf.mxu0
    %v718 = vadd.f32 0.0, %v717
    %719 = vdwg.mxu0
    %v720 = vld [vmem:[%s7] sm:$0xff]
    %v721 = vld [vmem:[%s7 + $0x8] sm:$0xff]
    %v722 = vld [vmem:[%s7 + $0x10] sm:$0xff]
    %v723 = vld [vmem:[%s7 + $0x18] sm:$0xff]
    %v724 = vld [vmem:[%s8] sm:$0x1]
    %v726 = vperm.slane %v724, 0
    %v729 = vsel %vm61, %v698, 0
    %731 = vmatpush.msra.mxu0 0.0
    %732 = vmatpush.msra.mxu0 0.0
    %733 = vmatpush.msra.mxu0 0.0
    %734 = vmatpush.msra.mxu0 0.0
    %735 = vmatpush.msra.mxu0 0.0
    %736 = vmatpush.msra.mxu0 0.0
    %737 = vmatpush.msra.mxu0 0.0
    %738 = vmatpush.msra.mxu0 0.0
    %739 = vmatpush.msra.mxu0 0.0
    %740 = vmatpush.msra.mxu0 0.0
    %741 = vmatpush.msra.mxu0 0.0
    %742 = vmatpush.msra.mxu0 0.0
    %743 = vmatpush.msra.mxu0 %v723
    %744 = vmatpush.msra.mxu0 %v722
    %745 = vmatpush.msra.mxu0 %v721
    %746 = vmatpush.msra.mxu0 %v720
    %747 = vmatmul.f32.gmra.mxu0 %v729
    %v748 = vpop.f32.mrf.mxu0
    %v749 = vadd.f32 %v726, %v748
    %750 = vdwg.mxu0
    %751 = vst [vmem:[#allocation2] sm:$0x3] %v749
    %v753 = vsel %vm61, %v718, 0
    %755 = vmatpush.msra.mxu0 0.0
    %756 = vmatpush.msra.mxu0 0.0
    %757 = vmatpush.msra.mxu0 0.0
    %758 = vmatpush.msra.mxu0 0.0
    %759 = vmatpush.msra.mxu0 0.0
    %760 = vmatpush.msra.mxu0 0.0
    %761 = vmatpush.msra.mxu0 0.0
    %762 = vmatpush.msra.mxu0 0.0
    %763 = vmatpush.msra.mxu0 0.0
    %764 = vmatpush.msra.mxu0 0.0
    %765 = vmatpush.msra.mxu0 0.0
    %766 = vmatpush.msra.mxu0 0.0
    %767 = vmatpush.msra.mxu0 %v723
    %768 = vmatpush.msra.mxu0 %v722
    %769 = vmatpush.msra.mxu0 %v721
    %770 = vmatpush.msra.mxu0 %v720
    %771 = vmatmul.f32.gmra.mxu0 %v753
    %v772 = vpop.f32.mrf.mxu0
    %v773 = vadd.f32 %v726, %v772
    %774 = vdwg.mxu0
    %775 = vst [vmem:[#allocation4] sm:$0x3] %v773
    %776 = vst.msk [vmem:[%s9] sm:$0xff] %vm308, %v542
    %777 = vst.msk [vmem:[%s9 + $0x8] sm:$0xff] %vm308, %v543
    %778 = vst.msk [vmem:[%s9 + $0x10] sm:$0xff] %vm308, %v544
    %779 = vst.msk [vmem:[%s9 + $0x18] sm:$0xff] %vm308, %v545
    %780 = vst.msk [vmem:[%s9 + $0x20] sm:$0xff] %vm308, %v546
    %781 = vst.msk [vmem:[%s9 + $0x28] sm:$0xff] %vm308, %v547
    %782 = vst.msk [vmem:[%s9 + $0x30] sm:$0xff] %vm308, %v548
    %783 = vst.msk [vmem:[%s9 + $0x38] sm:$0xff] %vm308, %v549
    %784 = vst.msk [vmem:[%s9 + $0x40] sm:$0xff] %vm308, %v550
    %785 = vst.msk [vmem:[%s9 + $0x48] sm:$0xff] %vm308, %v551
    %786 = vst.msk [vmem:[%s9 + $0x50] sm:$0xff] %vm308, %v552
    %787 = vst.msk [vmem:[%s9 + $0x58] sm:$0xff] %vm308, %v553
    %788 = vst.msk [vmem:[%s9 + $0x60] sm:$0xff] %vm308, %v554
    %789 = vst.msk [vmem:[%s9 + $0x68] sm:$0xff] %vm308, %v555
    %790 = vst.msk [vmem:[%s9 + $0x70] sm:$0xff] %vm308, %v556
    %791 = vst.msk [vmem:[%s9 + $0x78] sm:$0xff] %vm308, %v557
    %808 = vrot.lane.b32.xlu0 %v632, 64
    %v809 = vpop.permute.xlu0 %808
    %810 = vrot.lane.b32.xlu0 %v635, 64
    %v811 = vpop.permute.xlu0 %810
    %812 = vrot.lane.b32.xlu0 %v638, 64
    %v813 = vpop.permute.xlu0 %812
    %814 = vrot.lane.b32.xlu0 %v641, 64
    %v815 = vpop.permute.xlu0 %814
    %816 = vrot.lane.b32.xlu0 %v644, 64
    %v817 = vpop.permute.xlu0 %816
    %818 = vrot.lane.b32.xlu0 %v647, 64
    %v819 = vpop.permute.xlu0 %818
    %820 = vrot.lane.b32.xlu0 %v650, 64
    %v821 = vpop.permute.xlu0 %820
    %822 = vrot.lane.b32.xlu0 %v653, 64
    %v823 = vpop.permute.xlu0 %822
    %824 = vrot.lane.b32.xlu0 %v656, 64
    %v825 = vpop.permute.xlu0 %824
    %826 = vrot.lane.b32.xlu0 %v659, 64
    %v827 = vpop.permute.xlu0 %826
    %828 = vrot.lane.b32.xlu0 %v662, 64
    %v829 = vpop.permute.xlu0 %828
    %830 = vrot.lane.b32.xlu0 %v665, 64
    %v831 = vpop.permute.xlu0 %830
    %832 = vrot.lane.b32.xlu0 %v668, 64
    %v833 = vpop.permute.xlu0 %832
    %834 = vrot.lane.b32.xlu0 %v671, 64
    %v835 = vpop.permute.xlu0 %834
    %836 = vrot.lane.b32.xlu0 %v674, 64
    %v837 = vpop.permute.xlu0 %836
    %838 = vrot.lane.b32.xlu0 %v677, 64
    %v839 = vpop.permute.xlu0 %838
    %vm856 = vcmask 785920
    %857 = vst.msk [vmem:[%s9] sm:$0xff] %vm856, %v809
    %858 = vst.msk [vmem:[%s9 + $0x8] sm:$0xff] %vm856, %v811
    %859 = vst.msk [vmem:[%s9 + $0x10] sm:$0xff] %vm856, %v813
    %860 = vst.msk [vmem:[%s9 + $0x18] sm:$0xff] %vm856, %v815
    %861 = vst.msk [vmem:[%s9 + $0x20] sm:$0xff] %vm856, %v817
    %862 = vst.msk [vmem:[%s9 + $0x28] sm:$0xff] %vm856, %v819
    %863 = vst.msk [vmem:[%s9 + $0x30] sm:$0xff] %vm856, %v821
    %864 = vst.msk [vmem:[%s9 + $0x38] sm:$0xff] %vm856, %v823
    %865 = vst.msk [vmem:[%s9 + $0x40] sm:$0xff] %vm856, %v825
    %866 = vst.msk [vmem:[%s9 + $0x48] sm:$0xff] %vm856, %v827
    %867 = vst.msk [vmem:[%s9 + $0x50] sm:$0xff] %vm856, %v829
    %868 = vst.msk [vmem:[%s9 + $0x58] sm:$0xff] %vm856, %v831
    %869 = vst.msk [vmem:[%s9 + $0x60] sm:$0xff] %vm856, %v833
    %870 = vst.msk [vmem:[%s9 + $0x68] sm:$0xff] %vm856, %v835
    %871 = vst.msk [vmem:[%s9 + $0x70] sm:$0xff] %vm856, %v837
    %872 = vst.msk [vmem:[%s9 + $0x78] sm:$0xff] %vm856, %v839
    %873 = vrot.lane.b32.xlu0 %v175, 96
    %v874 = vpop.permute.xlu0 %873
    %875 = vrot.lane.b32.xlu0 %v176, 96
    %v876 = vpop.permute.xlu0 %875
    %877 = vrot.lane.b32.xlu0 %v177, 96
    %v878 = vpop.permute.xlu0 %877
    %879 = vrot.lane.b32.xlu0 %v178, 96
    %v880 = vpop.permute.xlu0 %879
    %881 = vrot.lane.b32.xlu0 %v179, 96
    %v882 = vpop.permute.xlu0 %881
    %883 = vrot.lane.b32.xlu0 %v180, 96
    %v884 = vpop.permute.xlu0 %883
    %885 = vrot.lane.b32.xlu0 %v181, 96
    %v886 = vpop.permute.xlu0 %885
    %887 = vrot.lane.b32.xlu0 %v182, 96
    %v888 = vpop.permute.xlu0 %887
    %889 = vrot.lane.b32.xlu0 %v183, 96
    %v890 = vpop.permute.xlu0 %889
    %891 = vrot.lane.b32.xlu0 %v184, 96
    %v892 = vpop.permute.xlu0 %891
    %893 = vrot.lane.b32.xlu0 %v185, 96
    %v894 = vpop.permute.xlu0 %893
    %895 = vrot.lane.b32.xlu0 %v186, 96
    %v896 = vpop.permute.xlu0 %895
    %897 = vrot.lane.b32.xlu0 %v187, 96
    %v898 = vpop.permute.xlu0 %897
    %899 = vrot.lane.b32.xlu0 %v188, 96
    %v900 = vpop.permute.xlu0 %899
    %901 = vrot.lane.b32.xlu0 %v189, 96
    %v902 = vpop.permute.xlu0 %901
    %903 = vrot.lane.b32.xlu0 %v190, 96
    %v904 = vpop.permute.xlu0 %903
    %vm921 = vcmask 1048320
    %922 = vst.msk [vmem:[%s9] sm:$0xff] %vm921, %v874
    %923 = vst.msk [vmem:[%s9 + $0x8] sm:$0xff] %vm921, %v876
    %924 = vst.msk [vmem:[%s9 + $0x10] sm:$0xff] %vm921, %v878
    %925 = vst.msk [vmem:[%s9 + $0x18] sm:$0xff] %vm921, %v880
    %926 = vst.msk [vmem:[%s9 + $0x20] sm:$0xff] %vm921, %v882
    %927 = vst.msk [vmem:[%s9 + $0x28] sm:$0xff] %vm921, %v884
    %928 = vst.msk [vmem:[%s9 + $0x30] sm:$0xff] %vm921, %v886
    %929 = vst.msk [vmem:[%s9 + $0x38] sm:$0xff] %vm921, %v888
    %930 = vst.msk [vmem:[%s9 + $0x40] sm:$0xff] %vm921, %v890
    %931 = vst.msk [vmem:[%s9 + $0x48] sm:$0xff] %vm921, %v892
    %932 = vst.msk [vmem:[%s9 + $0x50] sm:$0xff] %vm921, %v894
    %933 = vst.msk [vmem:[%s9 + $0x58] sm:$0xff] %vm921, %v896
    %934 = vst.msk [vmem:[%s9 + $0x60] sm:$0xff] %vm921, %v898
    %935 = vst.msk [vmem:[%s9 + $0x68] sm:$0xff] %vm921, %v900
    %936 = vst.msk [vmem:[%s9 + $0x70] sm:$0xff] %vm921, %v902
    %937 = vst.msk [vmem:[%s9 + $0x78] sm:$0xff] %vm921, %v904
    // Predicated region
    $region38: #{augmem_forward.1} parent=1 // pred_check
      _
    $region39: #{augmem_forward.1} parent=1 // pred_check_branch
      %939 = sbr.rel (0) target = $region41
    $region40: #{augmem_forward.1} parent=1 // pred_region
      _
    $region41: #{augmem_forward.1} parent=1 // pred_fallthru
      _
    // Predicated region
    $region42: #{augmem_forward.1} parent=1 // pred_check
      _
    $region43: #{augmem_forward.1} parent=1 // pred_check_branch
      %941 = sbr.rel (0) target = $region45
    $region44: #{augmem_forward.1} parent=1 // pred_region
      %943 = vsyncadd [#allocation3], 0
      %s945 = sshll.u32 [#allocation2], 4
      %s946 = int_to_ptr.vmem [resolvable:$true] %s945
      %s947 = sshll.u32 %s10, 4
      %s948 = int_to_ptr.hbm [resolvable:$true] %s947
      %950 = dma.vmem_to_hbm [thread:$0]  %s946, 32, %s948, [#allocation3]
    $region45: #{augmem_forward.1} parent=1 // pred_fallthru
      _
    // Predicated region
    $region46: #{augmem_forward.1} parent=1 // pred_check
      _
    $region47: #{augmem_forward.1} parent=1 // pred_check_branch
      %952 = sbr.rel (0) target = $region49
    $region48: #{augmem_forward.1} parent=1 // pred_region
      %954 = vsyncadd [#allocation5], 0
      %s956 = sshll.u32 [#allocation4], 4
      %s957 = int_to_ptr.vmem [resolvable:$true] %s956
      %s958 = sshll.u32 %s11, 4
      %s959 = int_to_ptr.hbm [resolvable:$true] %s958
      %961 = dma.vmem_to_hbm [thread:$0]  %s957, 32, %s959, [#allocation5]
    $region49: #{augmem_forward.1} parent=1 // pred_fallthru
      _
    // Predicated region
    $region50: #{augmem_forward.1} parent=1 // pred_check
      _
    $region51: #{augmem_forward.1} parent=1 // pred_check_branch
      %963 = sbr.rel (0) target = $region53
    $region52: #{augmem_forward.1} parent=1 // pred_region
      _
    $region53: #{augmem_forward.1} parent=1 // pred_fallthru
      _
    // Predicated region
    $region54: #{augmem_forward.1} parent=1 // pred_check
      _
    $region55: #{augmem_forward.1} parent=1 // pred_check_branch
      %965 = sbr.rel (0) target = $region57
    $region56: #{augmem_forward.1} parent=1 // pred_region
      %967 = dma.done [#allocation3], 32
    $region57: #{augmem_forward.1} parent=1 // pred_fallthru
      _
    // Predicated region
    $region58: #{augmem_forward.1} parent=1 // pred_check
      _
    $region59: #{augmem_forward.1} parent=1 // pred_check_branch
      %969 = sbr.rel (0) target = $region61
    $region60: #{augmem_forward.1} parent=1 // pred_region
      %971 = dma.done [#allocation5], 32
    $region61: #{augmem_forward.1} parent=1 // pred_fallthru
      _
    %972 = vsyncpa [#allocation3], 1
    %973 = vsyncpa [#allocation5], 1

</llo_original>
